<compile_context>
chip_gen: v5e
topology: v5e:2x2
jax: 0.10.0
libtpu: 0.0.40
codegen_flags: <defaults>
</compile_context>

<pallas_src>
import functools
import math

import jax
import jax.numpy as jnp
from jax.experimental import pallas as pl
from jax.experimental.pallas import tpu as pltpu

# AdaptiveLIF constants (module defaults)
RM, DT, B0, BETA = 1.0, 1.0, 0.2, 1.8
LANE = 128


def _round_up(n, m):
    return ((n + m - 1) // m) * m


def recurrent_block_kernel(
    # inputs
    x_ref,                        # [B, In_p]   input slice for timestep t
    w_cat_ref,                    # [In_p+Hp, Hp]  pre-masked [W_in ; W_hh]
    b_in_ref, b_hh_ref,           # [1, Hp]
    alpha_ref, nalpha_ref,        # [1, Hp]  exp(-dt/tau_m), 1 - exp(-dt/tau_m)
    rho_ref, nrho_ref,            # [1, Hp]  exp(-dt/tau_adp), 1 - exp(-dt/tau_adp)
    # outputs
    spk_ref,                      # [B, Hp]  spikes for timestep t
    u_out_ref, eta_out_ref,       # [B, Hp]  final neuron state (resident)
    # VMEM scratch (state carried across the T grid)
    h_s, u_s, eta_s,
):
    t = pl.program_id(0)

    @pl.when(t == 0)
    def _():
        h_s[...] = jnp.zeros_like(h_s)
        u_s[...] = jnp.zeros_like(u_s)
        eta_s[...] = jnp.zeros_like(eta_s)

    # ---- fused sparse_in + sparse_hh: one MXU matmul on [x | h_last] ----
    xh = jnp.concatenate([x_ref[...], h_s[...]], axis=-1)      # [B, In_p+Hp]
    pre = jnp.dot(xh, w_cat_ref[...], preferred_element_type=jnp.float32)
    pre = pre + b_in_ref[...]
    # Module skips the recurrent projection (incl. its bias) on step 0;
    # h_last == 0 already removes the matmul part, only b_hh needs gating.
    hh_gate = jnp.where(t > 0, 1.0, 0.0)
    pre = pre + hh_gate * b_hh_ref[...]

    # ---- AdaptiveLIF: neuron_charge ----
    u_pre = u_s[...] * alpha_ref[...] + nalpha_ref[...] * RM * pre

    # ---- AdaptiveLIF: neuron_fire ----
    eta = eta_s[...]
    v_threshold = B0 + BETA * eta
    spikes = (u_pre - v_threshold > 0.0).astype(jnp.float32)
    # TODO(synk): surrogate gradient only shapes the backward pass; forward == Heaviside.

    # ---- AdaptiveLIF: update_neuronstat_after_fire ----
    u_new = u_pre - spikes * (eta * BETA + B0)
    eta_new = rho_ref[...] * eta + nrho_ref[...] * spikes

    # carry state + write outputs
    h_s[...] = spikes
    u_s[...] = u_new
    eta_s[...] = eta_new

    spk_ref[...] = spikes
    u_out_ref[...] = u_new
    eta_out_ref[...] = eta_new


@functools.partial(jax.jit, static_argnames=("h_size",))
def recurrent_block_sequence(packed, xs_p, h_size):
    """Run the whole T-step recurrence in a single Pallas kernel."""
    T, B, In_p = xs_p.shape
    Hp = packed["w_cat"].shape[1]

    const = lambda t: (0, 0)  # resident (loaded once, kept in VMEM)
    grid_spec = pltpu.PrefetchScalarGridSpec(
        num_scalar_prefetch=0,
        grid=(T,),
        in_specs=[
            pl.BlockSpec((None, B, In_p), lambda t: (t, 0, 0)),   # x_t
            pl.BlockSpec((In_p + Hp, Hp), const),                 # [W_in ; W_hh]
            pl.BlockSpec((1, Hp), const),                         # b_in
            pl.BlockSpec((1, Hp), const),                         # b_hh
            pl.BlockSpec((1, Hp), const),                         # alpha
            pl.BlockSpec((1, Hp), const),                         # 1 - alpha
            pl.BlockSpec((1, Hp), const),                         # rho
            pl.BlockSpec((1, Hp), const),                         # 1 - rho
        ],
        out_specs=[
            pl.BlockSpec((None, B, Hp), lambda t: (t, 0, 0)),     # spikes per step
            pl.BlockSpec((B, Hp), const),                         # final u
            pl.BlockSpec((B, Hp), const),                         # final eta
        ],
        scratch_shapes=[pltpu.VMEM((B, Hp), jnp.float32)] * 3,    # h, u, eta
    )

    spk_seq, u_fin, eta_fin = pl.pallas_call(
        recurrent_block_kernel,
        out_shape=(
            jax.ShapeDtypeStruct((T, B, Hp), jnp.float32),
            jax.ShapeDtypeStruct((B, Hp), jnp.float32),
            jax.ShapeDtypeStruct((B, Hp), jnp.float32),
        ),
        grid_spec=grid_spec,
        compiler_params=pltpu.CompilerParams(
            dimension_semantics=("arbitrary",),   # time is a true recurrence
        ),
    )(
        xs_p,
        packed["w_cat"], packed["b_in"], packed["b_hh"],
        packed["alpha"], packed["one_minus_alpha"],
        packed["rho"], packed["one_minus_rho"],
    )
    # Strip lane padding back to the logical hidden size.
    return spk_seq[..., :h_size], u_fin[:, :h_size], eta_fin[:, :h_size]


def init_params(key, in_size, h_size, sparsity=0.3):
    """Raw parameters, mirroring the PyTorch module's initialization."""
    k1, k2, k3, k4, k5, k6 = jax.random.split(key, 6)

    # sparse_in = SLinear(in_size, h_size): xavier-uniform weight, Linear bias
    bound_in = math.sqrt(6.0 / (in_size + h_size))
    w_in = jax.random.uniform(k1, (h_size, in_size), jnp.float32, -bound_in, bound_in)
    b_in = jax.random.uniform(
        k2, (h_size,), jnp.float32, -1.0 / math.sqrt(in_size), 1.0 / math.sqrt(in_size)
    )
    pcnt_in = jnp.percentile(jnp.abs(w_in), 100.0 * (1.0 - sparsity))
    m_in = (jnp.abs(w_in) >= pcnt_in).astype(jnp.float32)

    # sparse_hh = SLinear(h_size, h_size): mask from xavier init, then
    # nn.init.zeros_(weight) in recurrent_block.__init__ (so W_hh == 0).
    bound_hh = math.sqrt(6.0 / (2 * h_size))
    w_hh_init = jax.random.uniform(k3, (h_size, h_size), jnp.float32, -bound_hh, bound_hh)
    b_hh = jax.random.uniform(
        k4, (h_size,), jnp.float32, -1.0 / math.sqrt(h_size), 1.0 / math.sqrt(h_size)
    )
    pcnt_hh = jnp.percentile(jnp.abs(w_hh_init), 100.0 * (1.0 - sparsity))
    m_hh = (jnp.abs(w_hh_init) >= pcnt_hh).astype(jnp.float32)
    w_hh = jnp.zeros_like(w_hh_init)

    # AdaptiveLIF per-neuron time constants
    tau_m = 200.0 + 25.0 * jax.random.normal(k5, (h_size,), jnp.float32)
    tau_adp = 20.0 + 5.0 * jax.random.normal(k6, (h_size,), jnp.float32)

    return {
        "w_in": w_in, "m_in": m_in, "b_in": b_in,
        "w_hh": w_hh, "m_hh": m_hh, "b_hh": b_hh,
        "tau_m": tau_m, "tau_adp": tau_adp,
    }


def pack_params(raw, in_size, h_size):
    """Pre-mask, transpose, fuse, lane-pad and precompute alpha/rho."""
    in_p = _round_up(in_size, LANE)
    h_p = _round_up(h_size, LANE)

    # masks folded into weights; [out, in] -> [in, out]; zero-pad to lane dense
    w_in = (raw["w_in"] * raw["m_in"]).T       # [in, h]
    w_hh = (raw["w_hh"] * raw["m_hh"]).T       # [h, h]
    w_in_p = jnp.zeros((in_p, h_p), jnp.float32).at[:in_size, :h_size].set(w_in)
    w_hh_p = jnp.zeros((h_p, h_p), jnp.float32).at[:h_size, :h_size].set(w_hh)
    w_cat = jnp.concatenate([w_in_p, w_hh_p], axis=0)   # [in_p + h_p, h_p]

    def pad_row(v, fill=0.0):
        return jnp.full((1, h_p), fill, jnp.float32).at[0, :h_size].set(v)

    alpha = jnp.exp(-DT / raw["tau_m"])
    rho = jnp.exp(-DT / raw["tau_adp"])
    return {
        "w_cat": w_cat,
        "b_in": pad_row(raw["b_in"]),
        "b_hh": pad_row(raw["b_hh"]),
        "alpha": pad_row(alpha, 1.0),
        "one_minus_alpha": pad_row(1.0 - alpha, 0.0),
        "rho": pad_row(rho, 1.0),
        "one_minus_rho": pad_row(1.0 - rho, 0.0),
    }


if __name__ == "__main__":
    B, IN_SIZE, H_SIZE, T = 8, 16, 32, 4

    key = jax.random.PRNGKey(0)
    pkey, xkey = jax.random.split(key)
    raw = init_params(pkey, IN_SIZE, H_SIZE, sparsity=0.3)
    packed = pack_params(raw, IN_SIZE, H_SIZE)

    # Sequence of inputs [T, B, In], lane-padded to [T, B, In_p].
    xs = jax.random.normal(xkey, (T, B, IN_SIZE), jnp.float32)
    in_p = _round_up(IN_SIZE, LANE)
    xs_p = jnp.zeros((T, B, in_p), jnp.float32).at[..., :IN_SIZE].set(xs)

    spk_seq, u_fin, eta_fin = recurrent_block_sequence(packed, xs_p, H_SIZE)
    jax.block_until_ready((spk_seq, u_fin, eta_fin))

    assert spk_seq.shape == (T, B, H_SIZE)
    assert bool(jnp.all(jnp.isfinite(u_fin))) and bool(jnp.all(jnp.isfinite(eta_fin)))
    print("KERNEL_OK")
</pallas_src>

<mosaic_0001>
module attributes {stable_mosaic.version = 11 : i64} {
  func.func @recurrent_block_kernel(%arg0: i32, %arg1: memref<1x8x128xf32, #tpu.memory_space<vmem>>, %arg2: memref<256x128xf32, #tpu.memory_space<vmem>>, %arg3: memref<1x128xf32, #tpu.memory_space<vmem>>, %arg4: memref<1x128xf32, #tpu.memory_space<vmem>>, %arg5: memref<1x128xf32, #tpu.memory_space<vmem>>, %arg6: memref<1x128xf32, #tpu.memory_space<vmem>>, %arg7: memref<1x128xf32, #tpu.memory_space<vmem>>, %arg8: memref<1x128xf32, #tpu.memory_space<vmem>>, %arg9: memref<1x8x128xf32, #tpu.memory_space<vmem>>, %arg10: memref<8x128xf32, #tpu.memory_space<vmem>>, %arg11: memref<8x128xf32, #tpu.memory_space<vmem>>, %arg12: memref<8x128xf32, #tpu.memory_space<vmem>>, %arg13: memref<8x128xf32, #tpu.memory_space<vmem>>, %arg14: memref<8x128xf32, #tpu.memory_space<vmem>>) attributes {dimension_semantics = [#tpu.dimension_semantics<arbitrary>], iteration_bounds = array<i64: 4>, scalar_prefetch = 0 : i64, scratch_operands = 3 : i64, tpu.core_type = #tpu.core_type<tc>, window_params = [{transform_indices = @transform_0, window_bounds = array<i64: 1, 8, 128>}, {pipeline_mode = #tpu.pipeline_mode<synchronous>, transform_indices = @transform_1, window_bounds = array<i64: 256, 128>}, {pipeline_mode = #tpu.pipeline_mode<synchronous>, transform_indices = @transform_2, window_bounds = array<i64: 1, 128>}, {pipeline_mode = #tpu.pipeline_mode<synchronous>, transform_indices = @transform_3, window_bounds = array<i64: 1, 128>}, {pipeline_mode = #tpu.pipeline_mode<synchronous>, transform_indices = @transform_4, window_bounds = array<i64: 1, 128>}, {pipeline_mode = #tpu.pipeline_mode<synchronous>, transform_indices = @transform_5, window_bounds = array<i64: 1, 128>}, {pipeline_mode = #tpu.pipeline_mode<synchronous>, transform_indices = @transform_6, window_bounds = array<i64: 1, 128>}, {pipeline_mode = #tpu.pipeline_mode<synchronous>, transform_indices = @transform_7, window_bounds = array<i64: 1, 128>}, {transform_indices = @transform_8, window_bounds = array<i64: 1, 8, 128>}, {pipeline_mode = #tpu.pipeline_mode<synchronous>, transform_indices = @transform_9, window_bounds = array<i64: 8, 128>}, {pipeline_mode = #tpu.pipeline_mode<synchronous>, transform_indices = @transform_10, window_bounds = array<i64: 8, 128>}]} {
    %c0_i32 = arith.constant 0 : i32
    %0 = arith.cmpi eq, %arg0, %c0_i32 : i32
    %1 = arith.extui %0 : i1 to i32
    %c0_i32_0 = arith.constant 0 : i32
    %2 = arith.cmpi ne, %1, %c0_i32_0 : i32
    scf.if %2 {
      %cst_45 = arith.constant 0.000000e+00 : f32
      %60 = vector.broadcast %cst_45 : f32 to vector<8x128xf32>
      %c0_46 = arith.constant 0 : index
      %c0_47 = arith.constant 0 : index
      %61 = vector.load %arg12[%c0_46, %c0_47] : memref<8x128xf32, #tpu.memory_space<vmem>>, vector<8x128xf32>
      tpu.vector_store %arg12[%c0_46, %c0_47], %60 {strides = array<i32>} : memref<8x128xf32, #tpu.memory_space<vmem>>, vector<8x128xf32>,
      %cst_48 = arith.constant 0.000000e+00 : f32
      %62 = vector.broadcast %cst_48 : f32 to vector<8x128xf32>
      %c0_49 = arith.constant 0 : index
      %c0_50 = arith.constant 0 : index
      %63 = vector.load %arg13[%c0_49, %c0_50] : memref<8x128xf32, #tpu.memory_space<vmem>>, vector<8x128xf32>
      tpu.vector_store %arg13[%c0_49, %c0_50], %62 {strides = array<i32>} : memref<8x128xf32, #tpu.memory_space<vmem>>, vector<8x128xf32>,
      %cst_51 = arith.constant 0.000000e+00 : f32
      %64 = vector.broadcast %cst_51 : f32 to vector<8x128xf32>
      %c0_52 = arith.constant 0 : index
      %c0_53 = arith.constant 0 : index
      %65 = vector.load %arg14[%c0_52, %c0_53] : memref<8x128xf32, #tpu.memory_space<vmem>>, vector<8x128xf32>
      tpu.vector_store %arg14[%c0_52, %c0_53], %64 {strides = array<i32>} : memref<8x128xf32, #tpu.memory_space<vmem>>, vector<8x128xf32>,
    } else {
    }
    %c0 = arith.constant 0 : index
    %c0_1 = arith.constant 0 : index
    %c0_2 = arith.constant 0 : index
    %3 = vector.load %arg1[%c0, %c0_1, %c0_2] : memref<1x8x128xf32, #tpu.memory_space<vmem>>, vector<1x8x128xf32>
    %4 = vector.shape_cast %3 : vector<1x8x128xf32> to vector<8x128xf32>
    %c0_3 = arith.constant 0 : index
    %c0_4 = arith.constant 0 : index
    %5 = vector.load %arg12[%c0_3, %c0_4] : memref<8x128xf32, #tpu.memory_space<vmem>>, vector<8x128xf32>
    %6 = tpu.concatenate %4, %5 in 1 : vector<8x128xf32>, vector<8x128xf32> -> vector<8x256xf32>
    %c0_5 = arith.constant 0 : index
    %c0_6 = arith.constant 0 : index
    %7 = vector.load %arg2[%c0_5, %c0_6] : memref<256x128xf32, #tpu.memory_space<vmem>>, vector<256x128xf32>
    %cst = arith.constant dense<0.000000e+00> : vector<8x128xf32>
    %8 = tpu.matmul %6, %7, %cst {dimension_numbers = #tpu.dot_dimension_numbers<[1], [0], [0], [1], [0, 0, 1, 1], [], []>} : vector<8x256xf32>, vector<256x128xf32>, vector<8x128xf32> -> vector<8x128xf32>
    %c0_7 = arith.constant 0 : index
    %c0_8 = arith.constant 0 : index
    %9 = vector.load %arg3[%c0_7, %c0_8] : memref<1x128xf32, #tpu.memory_space<vmem>>, vector<1x128xf32>
    %10 = vector.broadcast %9 : vector<1x128xf32> to vector<8x128xf32>
    %11 = arith.addf %8, %10 : vector<8x128xf32>
    %c0_i32_9 = arith.constant 0 : i32
    %12 = arith.cmpi sgt, %arg0, %c0_i32_9 : i32
    %cst_10 = arith.constant 1.000000e+00 : f32
    %cst_11 = arith.constant 0.000000e+00 : f32
    %13 = arith.select %12, %cst_10, %cst_11 : f32
    %c0_12 = arith.constant 0 : index
    %c0_13 = arith.constant 0 : index
    %14 = vector.load %arg4[%c0_12, %c0_13] : memref<1x128xf32, #tpu.memory_space<vmem>>, vector<1x128xf32>
    %15 = vector.broadcast %13 : f32 to vector<1x128xf32>
    %16 = arith.mulf %15, %14 : vector<1x128xf32>
    %17 = vector.broadcast %16 : vector<1x128xf32> to vector<8x128xf32>
    %18 = arith.addf %11, %17 : vector<8x128xf32>
    %c0_14 = arith.constant 0 : index
    %c0_15 = arith.constant 0 : index
    %19 = vector.load %arg13[%c0_14, %c0_15] : memref<8x128xf32, #tpu.memory_space<vmem>>, vector<8x128xf32>
    %c0_16 = arith.constant 0 : index
    %c0_17 = arith.constant 0 : index
    %20 = vector.load %arg5[%c0_16, %c0_17] : memref<1x128xf32, #tpu.memory_space<vmem>>, vector<1x128xf32>
    %21 = vector.broadcast %20 : vector<1x128xf32> to vector<8x128xf32>
    %22 = arith.mulf %19, %21 : vector<8x128xf32>
    %c0_18 = arith.constant 0 : index
    %c0_19 = arith.constant 0 : index
    %23 = vector.load %arg6[%c0_18, %c0_19] : memref<1x128xf32, #tpu.memory_space<vmem>>, vector<1x128xf32>
    %cst_20 = arith.constant 1.000000e+00 : f32
    %24 = vector.broadcast %cst_20 : f32 to vector<1x128xf32>
    %25 = arith.mulf %23, %24 : vector<1x128xf32>
    %26 = vector.broadcast %25 : vector<1x128xf32> to vector<8x128xf32>
    %27 = arith.mulf %26, %18 : vector<8x128xf32>
    %28 = arith.addf %22, %27 : vector<8x128xf32>
    %c0_21 = arith.constant 0 : index
    %c0_22 = arith.constant 0 : index
    %29 = vector.load %arg14[%c0_21, %c0_22] : memref<8x128xf32, #tpu.memory_space<vmem>>, vector<8x128xf32>
    %cst_23 = arith.constant 1.800000e+00 : f32
    %30 = vector.broadcast %cst_23 : f32 to vector<8x128xf32>
    %31 = arith.mulf %30, %29 : vector<8x128xf32>
    %cst_24 = arith.constant 2.000000e-01 : f32
    %32 = vector.broadcast %cst_24 : f32 to vector<8x128xf32>
    %33 = arith.addf %32, %31 : vector<8x128xf32>
    %34 = arith.subf %28, %33 : vector<8x128xf32>
    %cst_25 = arith.constant 0.000000e+00 : f32
    %35 = vector.broadcast %cst_25 : f32 to vector<8x128xf32>
    %36 = arith.cmpf ogt, %34, %35 : vector<8x128xf32>
    %37 = arith.extui %36 : vector<8x128xi1> to vector<8x128xi32>
    %38 = arith.sitofp %37 : vector<8x128xi32> to vector<8x128xf32>
    %cst_26 = arith.constant 1.800000e+00 : f32
    %39 = vector.broadcast %cst_26 : f32 to vector<8x128xf32>
    %40 = arith.mulf %29, %39 : vector<8x128xf32>
    %cst_27 = arith.constant 2.000000e-01 : f32
    %41 = vector.broadcast %cst_27 : f32 to vector<8x128xf32>
    %42 = arith.addf %40, %41 : vector<8x128xf32>
    %43 = arith.mulf %38, %42 : vector<8x128xf32>
    %44 = arith.subf %28, %43 : vector<8x128xf32>
    %c0_28 = arith.constant 0 : index
    %c0_29 = arith.constant 0 : index
    %45 = vector.load %arg7[%c0_28, %c0_29] : memref<1x128xf32, #tpu.memory_space<vmem>>, vector<1x128xf32>
    %46 = vector.broadcast %45 : vector<1x128xf32> to vector<8x128xf32>
    %47 = arith.mulf %46, %29 : vector<8x128xf32>
    %c0_30 = arith.constant 0 : index
    %c0_31 = arith.constant 0 : index
    %48 = vector.load %arg8[%c0_30, %c0_31] : memref<1x128xf32, #tpu.memory_space<vmem>>, vector<1x128xf32>
    %49 = vector.broadcast %48 : vector<1x128xf32> to vector<8x128xf32>
    %50 = arith.mulf %49, %38 : vector<8x128xf32>
    %51 = arith.addf %47, %50 : vector<8x128xf32>
    %c0_32 = arith.constant 0 : index
    %c0_33 = arith.constant 0 : index
    %52 = vector.load %arg12[%c0_32, %c0_33] : memref<8x128xf32, #tpu.memory_space<vmem>>, vector<8x128xf32>
    tpu.vector_store %arg12[%c0_32, %c0_33], %38 {strides = array<i32>} : memref<8x128xf32, #tpu.memory_space<vmem>>, vector<8x128xf32>,
    %c0_34 = arith.constant 0 : index
    %c0_35 = arith.constant 0 : index
    %53 = vector.load %arg13[%c0_34, %c0_35] : memref<8x128xf32, #tpu.memory_space<vmem>>, vector<8x128xf32>
    tpu.vector_store %arg13[%c0_34, %c0_35], %44 {strides = array<i32>} : memref<8x128xf32, #tpu.memory_space<vmem>>, vector<8x128xf32>,
    %c0_36 = arith.constant 0 : index
    %c0_37 = arith.constant 0 : index
    %54 = vector.load %arg14[%c0_36, %c0_37] : memref<8x128xf32, #tpu.memory_space<vmem>>, vector<8x128xf32>
    tpu.vector_store %arg14[%c0_36, %c0_37], %51 {strides = array<i32>} : memref<8x128xf32, #tpu.memory_space<vmem>>, vector<8x128xf32>,
    %c0_38 = arith.constant 0 : index
    %c0_39 = arith.constant 0 : index
    %c0_40 = arith.constant 0 : index
    %55 = vector.load %arg9[%c0_38, %c0_39, %c0_40] : memref<1x8x128xf32, #tpu.memory_space<vmem>>, vector<1x8x128xf32>
    %56 = vector.shape_cast %55 : vector<1x8x128xf32> to vector<8x128xf32>
    %57 = vector.shape_cast %38 : vector<8x128xf32> to vector<1x8x128xf32>
    tpu.vector_store %arg9[%c0_38, %c0_39, %c0_40], %57 {strides = array<i32>} : memref<1x8x128xf32, #tpu.memory_space<vmem>>, vector<1x8x128xf32>,
    %c0_41 = arith.constant 0 : index
    %c0_42 = arith.constant 0 : index
    %58 = vector.load %arg10[%c0_41, %c0_42] : memref<8x128xf32, #tpu.memory_space<vmem>>, vector<8x128xf32>
    tpu.vector_store %arg10[%c0_41, %c0_42], %44 {strides = array<i32>} : memref<8x128xf32, #tpu.memory_space<vmem>>, vector<8x128xf32>,
    %c0_43 = arith.constant 0 : index
    %c0_44 = arith.constant 0 : index
    %59 = vector.load %arg11[%c0_43, %c0_44] : memref<8x128xf32, #tpu.memory_space<vmem>>, vector<8x128xf32>
    tpu.vector_store %arg11[%c0_43, %c0_44], %51 {strides = array<i32>} : memref<8x128xf32, #tpu.memory_space<vmem>>, vector<8x128xf32>,
    return
  }
  func.func @transform_0(%arg0: i32) -> (i32, i32, i32) {
    %c0_i32 = arith.constant 0 : i32
    %c0_i32_0 = arith.constant 0 : i32
    %c0_i32_1 = arith.constant 0 : i32
    return %arg0, %c0_i32, %c0_i32_0 : i32, i32, i32
  }
  func.func @transform_1(%arg0: i32) -> (i32, i32) {
    %c0_i32 = arith.constant 0 : i32
    %c0_i32_0 = arith.constant 0 : i32
    %c0_i32_1 = arith.constant 0 : i32
    return %c0_i32, %c0_i32_0 : i32, i32
  }
  func.func @transform_2(%arg0: i32) -> (i32, i32) {
    %c0_i32 = arith.constant 0 : i32
    %c0_i32_0 = arith.constant 0 : i32
    %c0_i32_1 = arith.constant 0 : i32
    return %c0_i32, %c0_i32_0 : i32, i32
  }
  func.func @transform_3(%arg0: i32) -> (i32, i32) {
    %c0_i32 = arith.constant 0 : i32
    %c0_i32_0 = arith.constant 0 : i32
    %c0_i32_1 = arith.constant 0 : i32
    return %c0_i32, %c0_i32_0 : i32, i32
  }
  func.func @transform_4(%arg0: i32) -> (i32, i32) {
    %c0_i32 = arith.constant 0 : i32
    %c0_i32_0 = arith.constant 0 : i32
    %c0_i32_1 = arith.constant 0 : i32
    return %c0_i32, %c0_i32_0 : i32, i32
  }
  func.func @transform_5(%arg0: i32) -> (i32, i32) {
    %c0_i32 = arith.constant 0 : i32
    %c0_i32_0 = arith.constant 0 : i32
    %c0_i32_1 = arith.constant 0 : i32
    return %c0_i32, %c0_i32_0 : i32, i32
  }
  func.func @transform_6(%arg0: i32) -> (i32, i32) {
    %c0_i32 = arith.constant 0 : i32
    %c0_i32_0 = arith.constant 0 : i32
    %c0_i32_1 = arith.constant 0 : i32
    return %c0_i32, %c0_i32_0 : i32, i32
  }
  func.func @transform_7(%arg0: i32) -> (i32, i32) {
    %c0_i32 = arith.constant 0 : i32
    %c0_i32_0 = arith.constant 0 : i32
    %c0_i32_1 = arith.constant 0 : i32
    return %c0_i32, %c0_i32_0 : i32, i32
  }
  func.func @transform_8(%arg0: i32) -> (i32, i32, i32) {
    %c0_i32 = arith.constant 0 : i32
    %c0_i32_0 = arith.constant 0 : i32
    %c0_i32_1 = arith.constant 0 : i32
    return %arg0, %c0_i32, %c0_i32_0 : i32, i32, i32
  }
  func.func @transform_9(%arg0: i32) -> (i32, i32) {
    %c0_i32 = arith.constant 0 : i32
    %c0_i32_0 = arith.constant 0 : i32
    %c0_i32_1 = arith.constant 0 : i32
    return %c0_i32, %c0_i32_0 : i32, i32
  }
  func.func @transform_10(%arg0: i32) -> (i32, i32) {
    %c0_i32 = arith.constant 0 : i32
    %c0_i32_0 = arith.constant 0 : i32
    %c0_i32_1 = arith.constant 0 : i32
    return %c0_i32, %c0_i32_0 : i32, i32
  }
}

</mosaic_0001>

<llo_original>
// kernel: recurrent_block_sequence.1
$region0: #{recurrent_block_sequence.1}
  #allocation0 [shape = 'u32[]', space=smem, size = 0x4, offset = 0x4, fixed_abs, tag = 'smem constant byte address 0x4 - core index']
  #allocation1 [shape = 'u32[72,128]{1,0:T(1,128)}', space=vmem, size = 0x9000, scoped, tag = 'internal scratch']
  #allocation2 [shape = 'f32[8,128]{1,0:T(8,128)}', space=vmem, size = 0x1000, scoped, tag = 'scratch operand']
  #allocation3 [shape = 'f32[8,128]{1,0:T(8,128)}', space=vmem, size = 0x1000, scoped, tag = 'scratch operand']
  #allocation4 [shape = 'f32[8,128]{1,0:T(8,128)}', space=vmem, size = 0x1000, scoped, tag = 'scratch operand']
  %s0 = inlined_call_operand.hbm [shape: f32[4,8,128], index: 0, kind: input, shape index: {}]
  %s1 = inlined_call_operand.hbm [shape: f32[256,128], index: 1, kind: input, shape index: {}]
  %s2 = inlined_call_operand.vmem [shape: f32[1,128], index: 2, kind: input, shape index: {}]
  %s3 = inlined_call_operand.hbm [shape: f32[1,128], index: 3, kind: input, shape index: {}]
  %s4 = inlined_call_operand.hbm [shape: f32[1,128], index: 4, kind: input, shape index: {}]
  %s5 = inlined_call_operand.vmem [shape: f32[1,128], index: 5, kind: input, shape index: {}]
  %s6 = inlined_call_operand.vmem [shape: f32[1,128], index: 6, kind: input, shape index: {}]
  %s7 = inlined_call_operand.hbm [shape: f32[1,128], index: 7, kind: input, shape index: {}]
  %s8 = inlined_call_operand.hbm [shape: f32[4,8,128], index: 8, kind: output, shape index: {0}]
  %s9 = inlined_call_operand.hbm [shape: f32[8,128], index: 9, kind: output, shape index: {1}]
  %s10 = inlined_call_operand.hbm [shape: f32[8,128], index: 10, kind: output, shape index: {2}]
  %11 = xla_tuple %s8, %s9, %s10
  %s12 = sld [smem:[#allocation0]]
  $region105: #{recurrent_block_sequence.1} parent=0
    _
  %s14 = ssub.s32 1, %s12
  %s15 = scalar_select 0, %s14, %s12
  $region1: #{recurrent_block_sequence.1} parent=0
    #allocation5 [shape = 'u8[8192]{0}', space=vmem, size = 0x2000, scoped, tag = 'input window, operand 0']
    #allocation6 [shape = 's32[2]{0}', space=sflag, size = 0x8, scoped, tag = 'scoped memory for recurrent_block_sequence.1']
    #allocation7 [shape = 's32[2]{0}', space=sflag, size = 0x8, scoped, tag = 'scoped memory for recurrent_block_sequence.1']
    #allocation8 [shape = 'u8[131072]{0}', space=vmem, size = 0x20000, scoped, tag = 'input window, operand 1, single buffered']
    #allocation9 [shape = 's32[1]{0}', space=sflag, size = 0x4, scoped, tag = 'scoped memory for recurrent_block_sequence.1']
    #allocation10 [shape = 'u8[512]{0}', space=vmem, size = 0x400, scoped, tag = 'input window, operand 3, single buffered']
    #allocation11 [shape = 'u8[512]{0}', space=vmem, size = 0x400, scoped, tag = 'input window, operand 4, single buffered']
    #allocation12 [shape = 's32[1]{0}', space=sflag, size = 0x4, scoped, tag = 'scoped memory for recurrent_block_sequence.1']
    #allocation13 [shape = 'u8[512]{0}', space=vmem, size = 0x400, scoped, tag = 'input window, operand 7, single buffered']
    #allocation14 [shape = 'u8[8192]{0}', space=vmem, size = 0x2000, scoped, tag = 'output window, operand 0']
    #allocation15 [shape = 'u8[4096]{0}', space=vmem, size = 0x1000, scoped, tag = 'output window, operand 1, single buffered']
    #allocation16 [shape = 's32[1]{0}', space=sflag, size = 0x4, scoped, tag = 'scoped memory for recurrent_block_sequence.1']
    #allocation17 [shape = 'u8[4096]{0}', space=vmem, size = 0x1000, scoped, tag = 'output window, operand 2, single buffered']
    %16 = vsyncpa [#allocation6], 0
    %s17 = scalar_lea.sflag [#allocation6], 1
    %18 = vsyncpa %s17, 0
    %19 = vsyncpa [#allocation9], 0
    %20 = vsyncpa [#allocation12], 0
    %21 = vsyncpa [#allocation7], 0
    %s22 = scalar_lea.sflag [#allocation7], 1
    %23 = vsyncpa %s22, 0
    %24 = vsyncpa [#allocation16], 0
    loop: start=0, step=1, limit=6
    $region2: #{recurrent_block_sequence.1} parent=1 // loop_pre_header
      _
    $region3: #{recurrent_block_sequence.1} parent=1 // loop_header
      %s26 = sphi 0, %s30
      %p27 = scmp.ge.s32.totalorder %s26, 6
      %s36 = sphi 0, %s38
      %s39 = sphi 0, %s36
      %s40 = sphi 0, %s39
      %s56 = sphi 0, %s40
      %s60 = sphi 0, %s60
      %s62 = sphi 0, %s60
      %s63 = sphi 0, %s62
      %s77 = sphi 0, %s63
      %s81 = sphi 0, %s81
      %s83 = sphi 0, %s81
      %s84 = sphi 0, %s83
      %s98 = sphi 0, %s84
      %s102 = sphi 0, %s102
      %s104 = sphi 0, %s102
      %s105 = sphi 0, %s104
      %s119 = sphi 0, %s105
      %s123 = sphi 0, %s123
      %s125 = sphi 0, %s123
      %s126 = sphi 0, %s125
      %s140 = sphi 0, %s126
      %s144 = sphi 0, %s144
      %s146 = sphi 0, %s144
      %s147 = sphi 0, %s146
      %s161 = sphi 0, %s147
      %s165 = sphi 0, %s165
      %s167 = sphi 0, %s165
      %s168 = sphi 0, %s167
      %s182 = sphi 0, %s168
      %s186 = sphi 0, %s186
      %s188 = sphi 0, %s186
      %s189 = sphi 0, %s188
      %s203 = sphi 0, %s189
      %s209 = sphi 0, %s211
      %s212 = sphi 0, %s209
      %s213 = sphi 0, %s212
      %s229 = sphi 0, %s213
      %s233 = sphi 0, %s233
      %s235 = sphi 0, %s233
      %s236 = sphi 0, %s235
      %s250 = sphi 0, %s236
      %s254 = sphi 0, %s254
      %s256 = sphi 0, %s254
      %s257 = sphi 0, %s256
      %s271 = sphi 0, %s257
    $region4: #{recurrent_block_sequence.1} parent=1 // loop_header_branch
      %29 = sbr.rel (%p27) target = $region8
    $region5: #{recurrent_block_sequence.1} parent=1 // loop_body
      %s31 = ssub.s32 %s26, 1
      %s32 = ssub.s32 %s26, 2
      %s33 = sadd.s32 %s26, 1
      %s34 = ssub.s32 %s26, %s33
      %p35 = scmp.eq.s32.totalorder %s34, 0
      %s37 = sadd.s32 %s36, 1
      %s38 = scalar_select %p35, %s36, %s37
      %p41 = pneg %p35
      %p42 = scmp.eq.s32.totalorder %s26, 3
      %p43 = por %p41, %p42
      %p44 = scmp.ne.s32.totalorder %s36, %s39
      %p45 = scmp.eq.s32.totalorder %s26, 0
      %p46 = por %p44, %p45
      %p47 = scmp.ne.s32.totalorder %s36, %s39
      %p48 = scmp.eq.s32.totalorder %s31, 3
      %p49 = por %p47, %p48
      %p50 = scmp.ne.s32.totalorder %s39, %s40
      %p51 = scmp.eq.s32.totalorder %s31, 0
      %p52 = por %p50, %p51
      %p53 = scmp.ne.s32.totalorder %s39, %s40
      %p54 = scmp.eq.s32.totalorder %s32, 3
      %p55 = por %p53, %p54
      %p57 = scmp.ne.s32.totalorder %s40, %s56
      %p58 = scmp.eq.s32.totalorder %s32, 0
      %p59 = por %p57, %p58
      %s61 = sadd.s32 %s60, 1
      %p64 = scmp.eq.s32.totalorder %s26, 3
      %p65 = scmp.ne.s32.totalorder %s60, %s62
      %p66 = scmp.eq.s32.totalorder %s26, 0
      %p67 = por %p65, %p66
      %p68 = scmp.ne.s32.totalorder %s60, %s62
      %p69 = scmp.eq.s32.totalorder %s31, 3
      %p70 = por %p68, %p69
      %p71 = scmp.ne.s32.totalorder %s62, %s63
      %p72 = scmp.eq.s32.totalorder %s31, 0
      %p73 = por %p71, %p72
      %p74 = scmp.ne.s32.totalorder %s62, %s63
      %p75 = scmp.eq.s32.totalorder %s32, 3
      %p76 = por %p74, %p75
      %p78 = scmp.ne.s32.totalorder %s63, %s77
      %p79 = scmp.eq.s32.totalorder %s32, 0
      %p80 = por %p78, %p79
      %s82 = sadd.s32 %s81, 1
      %p85 = scmp.eq.s32.totalorder %s26, 3
      %p86 = scmp.ne.s32.totalorder %s81, %s83
      %p87 = scmp.eq.s32.totalorder %s26, 0
      %p88 = por %p86, %p87
      %p89 = scmp.ne.s32.totalorder %s81, %s83
      %p90 = scmp.eq.s32.totalorder %s31, 3
      %p91 = por %p89, %p90
      %p92 = scmp.ne.s32.totalorder %s83, %s84
      %p93 = scmp.eq.s32.totalorder %s31, 0
      %p94 = por %p92, %p93
      %p95 = scmp.ne.s32.totalorder %s83, %s84
      %p96 = scmp.eq.s32.totalorder %s32, 3
      %p97 = por %p95, %p96
      %p99 = scmp.ne.s32.totalorder %s84, %s98
      %p100 = scmp.eq.s32.totalorder %s32, 0
      %p101 = por %p99, %p100
      %s103 = sadd.s32 %s102, 1
      %p106 = scmp.eq.s32.totalorder %s26, 3
      %p107 = scmp.ne.s32.totalorder %s102, %s104
      %p108 = scmp.eq.s32.totalorder %s26, 0
      %p109 = por %p107, %p108
      %p110 = scmp.ne.s32.totalorder %s102, %s104
      %p111 = scmp.eq.s32.totalorder %s31, 3
      %p112 = por %p110, %p111
      %p113 = scmp.ne.s32.totalorder %s104, %s105
      %p114 = scmp.eq.s32.totalorder %s31, 0
      %p115 = por %p113, %p114
      %p116 = scmp.ne.s32.totalorder %s104, %s105
      %p117 = scmp.eq.s32.totalorder %s32, 3
      %p118 = por %p116, %p117
      %p120 = scmp.ne.s32.totalorder %s105, %s119
      %p121 = scmp.eq.s32.totalorder %s32, 0
      %p122 = por %p120, %p121
      %s124 = sadd.s32 %s123, 1
      %p127 = scmp.eq.s32.totalorder %s26, 3
      %p128 = scmp.ne.s32.totalorder %s123, %s125
      %p129 = scmp.eq.s32.totalorder %s26, 0
      %p130 = por %p128, %p129
      %p131 = scmp.ne.s32.totalorder %s123, %s125
      %p132 = scmp.eq.s32.totalorder %s31, 3
      %p133 = por %p131, %p132
      %p134 = scmp.ne.s32.totalorder %s125, %s126
      %p135 = scmp.eq.s32.totalorder %s31, 0
      %p136 = por %p134, %p135
      %p137 = scmp.ne.s32.totalorder %s125, %s126
      %p138 = scmp.eq.s32.totalorder %s32, 3
      %p139 = por %p137, %p138
      %p141 = scmp.ne.s32.totalorder %s126, %s140
      %p142 = scmp.eq.s32.totalorder %s32, 0
      %p143 = por %p141, %p142
      %s145 = sadd.s32 %s144, 1
      %p148 = scmp.eq.s32.totalorder %s26, 3
      %p149 = scmp.ne.s32.totalorder %s144, %s146
      %p150 = scmp.eq.s32.totalorder %s26, 0
      %p151 = por %p149, %p150
      %p152 = scmp.ne.s32.totalorder %s144, %s146
      %p153 = scmp.eq.s32.totalorder %s31, 3
      %p154 = por %p152, %p153
      %p155 = scmp.ne.s32.totalorder %s146, %s147
      %p156 = scmp.eq.s32.totalorder %s31, 0
      %p157 = por %p155, %p156
      %p158 = scmp.ne.s32.totalorder %s146, %s147
      %p159 = scmp.eq.s32.totalorder %s32, 3
      %p160 = por %p158, %p159
      %p162 = scmp.ne.s32.totalorder %s147, %s161
      %p163 = scmp.eq.s32.totalorder %s32, 0
      %p164 = por %p162, %p163
      %s166 = sadd.s32 %s165, 1
      %p169 = scmp.eq.s32.totalorder %s26, 3
      %p170 = scmp.ne.s32.totalorder %s165, %s167
      %p171 = scmp.eq.s32.totalorder %s26, 0
      %p172 = por %p170, %p171
      %p173 = scmp.ne.s32.totalorder %s165, %s167
      %p174 = scmp.eq.s32.totalorder %s31, 3
      %p175 = por %p173, %p174
      %p176 = scmp.ne.s32.totalorder %s167, %s168
      %p177 = scmp.eq.s32.totalorder %s31, 0
      %p178 = por %p176, %p177
      %p179 = scmp.ne.s32.totalorder %s167, %s168
      %p180 = scmp.eq.s32.totalorder %s32, 3
      %p181 = por %p179, %p180
      %p183 = scmp.ne.s32.totalorder %s168, %s182
      %p184 = scmp.eq.s32.totalorder %s32, 0
      %p185 = por %p183, %p184
      %s187 = sadd.s32 %s186, 1
      %p190 = scmp.eq.s32.totalorder %s26, 3
      %p191 = scmp.ne.s32.totalorder %s186, %s188
      %p192 = scmp.eq.s32.totalorder %s26, 0
      %p193 = por %p191, %p192
      %p194 = scmp.ne.s32.totalorder %s186, %s188
      %p195 = scmp.eq.s32.totalorder %s31, 3
      %p196 = por %p194, %p195
      %p197 = scmp.ne.s32.totalorder %s188, %s189
      %p198 = scmp.eq.s32.totalorder %s31, 0
      %p199 = por %p197, %p198
      %p200 = scmp.ne.s32.totalorder %s188, %s189
      %p201 = scmp.eq.s32.totalorder %s32, 3
      %p202 = por %p200, %p201
      %p204 = scmp.ne.s32.totalorder %s189, %s203
      %p205 = scmp.eq.s32.totalorder %s32, 0
      %p206 = por %p204, %p205
      %s207 = ssub.s32 %s26, %s33
      %p208 = scmp.eq.s32.totalorder %s207, 0
      %s210 = sadd.s32 %s209, 1
      %s211 = scalar_select %p208, %s209, %s210
      %p214 = pneg %p208
      %p215 = scmp.eq.s32.totalorder %s26, 3
      %p216 = por %p214, %p215
      %p217 = scmp.ne.s32.totalorder %s209, %s212
      %p218 = scmp.eq.s32.totalorder %s26, 0
      %p219 = por %p217, %p218
      %p220 = scmp.ne.s32.totalorder %s209, %s212
      %p221 = scmp.eq.s32.totalorder %s31, 3
      %p222 = por %p220, %p221
      %p223 = scmp.ne.s32.totalorder %s212, %s213
      %p224 = scmp.eq.s32.totalorder %s31, 0
      %p225 = por %p223, %p224
      %p226 = scmp.ne.s32.totalorder %s212, %s213
      %p227 = scmp.eq.s32.totalorder %s32, 3
      %p228 = por %p226, %p227
      %p230 = scmp.ne.s32.totalorder %s213, %s229
      %p231 = scmp.eq.s32.totalorder %s32, 0
      %p232 = por %p230, %p231
      %s234 = sadd.s32 %s233, 1
      %p237 = scmp.eq.s32.totalorder %s26, 3
      %p238 = scmp.ne.s32.totalorder %s233, %s235
      %p239 = scmp.eq.s32.totalorder %s26, 0
      %p240 = por %p238, %p239
      %p241 = scmp.ne.s32.totalorder %s233, %s235
      %p242 = scmp.eq.s32.totalorder %s31, 3
      %p243 = por %p241, %p242
      %p244 = scmp.ne.s32.totalorder %s235, %s236
      %p245 = scmp.eq.s32.totalorder %s31, 0
      %p246 = por %p244, %p245
      %p247 = scmp.ne.s32.totalorder %s235, %s236
      %p248 = scmp.eq.s32.totalorder %s32, 3
      %p249 = por %p247, %p248
      %p251 = scmp.ne.s32.totalorder %s236, %s250
      %p252 = scmp.eq.s32.totalorder %s32, 0
      %p253 = por %p251, %p252
      %s255 = sadd.s32 %s254, 1
      %p258 = scmp.eq.s32.totalorder %s26, 3
      %p259 = scmp.ne.s32.totalorder %s254, %s256
      %p260 = scmp.eq.s32.totalorder %s26, 0
      %p261 = por %p259, %p260
      %p262 = scmp.ne.s32.totalorder %s254, %s256
      %p263 = scmp.eq.s32.totalorder %s31, 3
      %p264 = por %p262, %p263
      %p265 = scmp.ne.s32.totalorder %s256, %s257
      %p266 = scmp.eq.s32.totalorder %s31, 0
      %p267 = por %p265, %p266
      %p268 = scmp.ne.s32.totalorder %s256, %s257
      %p269 = scmp.eq.s32.totalorder %s32, 3
      %p270 = por %p268, %p269
      %p272 = scmp.ne.s32.totalorder %s257, %s271
      %p273 = scmp.eq.s32.totalorder %s32, 0
      %p274 = por %p272, %p273
      %p275 = scmp.le.s32.totalorder 1, %s26
      %p276 = scmp.lt.s32.totalorder %s26, 5
      %p277 = pnand %p275, %p276
      %p278 = pneg %p277
      // Predicated region
      $region9: #{recurrent_block_sequence.1} parent=5 // pred_check
        _
      $region10: #{recurrent_block_sequence.1} parent=5 // pred_check_branch
        %280 = sbr.rel (%p277) target = $region12
      $region11: #{recurrent_block_sequence.1} parent=5 // pred_region
        %s281 = ssub.s32 %s26, 1
        // Predicated region
        $region13: #{recurrent_block_sequence.1} parent=11 // pred_check
          %p282 = pneg %p73
        $region14: #{recurrent_block_sequence.1} parent=11 // pred_check_branch
          %284 = sbr.rel (%p282) target = $region16
        $region15: #{recurrent_block_sequence.1} parent=11 // pred_region
          %286 = vsyncadd [#allocation9], 0
          %s287 = sshll.u32 %s1, 4
          %s288 = int_to_ptr.hbm [resolvable:$true] %s287
          %s289 = sshll.u32 [#allocation8], 4
          %s290 = int_to_ptr.vmem [resolvable:$true] %s289
          %295 = dma.hbm_to_vmem [thread:$0]  %s288, 4096, %s290, [#allocation9], 128, 128, 8
        $region16: #{recurrent_block_sequence.1} parent=11 // pred_fallthru
          _
        // Predicated region
        $region17: #{recurrent_block_sequence.1} parent=11 // pred_check
          %p296 = pneg %p94
        $region18: #{recurrent_block_sequence.1} parent=11 // pred_check_branch
          %298 = sbr.rel (%p296) target = $region20
        $region19: #{recurrent_block_sequence.1} parent=11 // pred_region
          _
        $region20: #{recurrent_block_sequence.1} parent=11 // pred_fallthru
          _
        // Predicated region
        $region21: #{recurrent_block_sequence.1} parent=11 // pred_check
          %p299 = pneg %p115
        $region22: #{recurrent_block_sequence.1} parent=11 // pred_check_branch
          %301 = sbr.rel (%p299) target = $region24
        $region23: #{recurrent_block_sequence.1} parent=11 // pred_region
          %303 = vsyncadd [#allocation9], 0
          %s305 = sshll.u32 %s3, 4
          %s306 = int_to_ptr.hbm [resolvable:$true] %s305
          %s307 = sshll.u32 [#allocation10], 4
          %s308 = int_to_ptr.vmem [resolvable:$true] %s307
          %310 = dma.hbm_to_vmem [thread:$0]  %s306, 16, %s308, [#allocation9]
        $region24: #{recurrent_block_sequence.1} parent=11 // pred_fallthru
          _
        // Predicated region
        $region25: #{recurrent_block_sequence.1} parent=11 // pred_check
          %p311 = pneg %p136
        $region26: #{recurrent_block_sequence.1} parent=11 // pred_check_branch
          %313 = sbr.rel (%p311) target = $region28
        $region27: #{recurrent_block_sequence.1} parent=11 // pred_region
          %315 = vsyncadd [#allocation12], 0
          %s317 = sshll.u32 %s4, 4
          %s318 = int_to_ptr.hbm [resolvable:$true] %s317
          %s319 = sshll.u32 [#allocation11], 4
          %s320 = int_to_ptr.vmem [resolvable:$true] %s319
          %322 = dma.hbm_to_vmem [thread:$0]  %s318, 16, %s320, [#allocation12]
        $region28: #{recurrent_block_sequence.1} parent=11 // pred_fallthru
          _
        // Predicated region
        $region29: #{recurrent_block_sequence.1} parent=11 // pred_check
          %p323 = pneg %p157
        $region30: #{recurrent_block_sequence.1} parent=11 // pred_check_branch
          %325 = sbr.rel (%p323) target = $region32
        $region31: #{recurrent_block_sequence.1} parent=11 // pred_region
          _
        $region32: #{recurrent_block_sequence.1} parent=11 // pred_fallthru
          _
        // Predicated region
        $region33: #{recurrent_block_sequence.1} parent=11 // pred_check
          %p326 = pneg %p178
        $region34: #{recurrent_block_sequence.1} parent=11 // pred_check_branch
          %328 = sbr.rel (%p326) target = $region36
        $region35: #{recurrent_block_sequence.1} parent=11 // pred_region
          _
        $region36: #{recurrent_block_sequence.1} parent=11 // pred_fallthru
          _
        // Predicated region
        $region37: #{recurrent_block_sequence.1} parent=11 // pred_check
          %p329 = pneg %p199
        $region38: #{recurrent_block_sequence.1} parent=11 // pred_check_branch
          %331 = sbr.rel (%p329) target = $region40
        $region39: #{recurrent_block_sequence.1} parent=11 // pred_region
          %333 = vsyncadd [#allocation12], 0
          %s335 = sshll.u32 %s7, 4
          %s336 = int_to_ptr.hbm [resolvable:$true] %s335
          %s337 = sshll.u32 [#allocation13], 4
          %s338 = int_to_ptr.vmem [resolvable:$true] %s337
          %340 = dma.hbm_to_vmem [thread:$0]  %s336, 16, %s338, [#allocation12]
        $region40: #{recurrent_block_sequence.1} parent=11 // pred_fallthru
          _
      $region12: #{recurrent_block_sequence.1} parent=5 // pred_fallthru
        _
      %p341 = scmp.lt.s32.totalorder %s26, 4
      // Predicated region
      $region41: #{recurrent_block_sequence.1} parent=5 // pred_check
        %p342 = pneg %p341
      $region42: #{recurrent_block_sequence.1} parent=5 // pred_check_branch
        %344 = sbr.rel (%p342) target = $region44
      $region43: #{recurrent_block_sequence.1} parent=5 // pred_region
        // Predicated region
        $region45: #{recurrent_block_sequence.1} parent=43 // pred_check
          %p345 = pneg %p46
        $region46: #{recurrent_block_sequence.1} parent=43 // pred_check_branch
          %347 = sbr.rel (%p345) target = $region48
        $region47: #{recurrent_block_sequence.1} parent=43 // pred_region
          %s348 = sand.u32 %s36, 1
          %s349 = scalar_lea.sflag [#allocation6], %s348
          %s350 = sand.u32 %s36, 1
          %s351 = smul.addr %s350, 8
          %s352 = scalar_lea.vmem [#allocation5], %s351
          %354 = vsyncadd %s349, 0
          %s355 = smul.addr %s26, 8
          %s356 = scalar_lea.hbm %s0, %s355
          %s358 = sshll.u32 %s356, 4
          %s359 = int_to_ptr.hbm [resolvable:$true] %s358
          %s360 = sshll.u32 %s352, 4
          %s361 = int_to_ptr.vmem [resolvable:$true] %s360
          %363 = dma.hbm_to_vmem [thread:$0]  %s359, 128, %s361, %s349
        $region48: #{recurrent_block_sequence.1} parent=43 // pred_fallthru
          _
      $region44: #{recurrent_block_sequence.1} parent=5 // pred_fallthru
        _
      %p364 = scmp.le.s32.totalorder 1, %s26
      %p365 = scmp.lt.s32.totalorder %s26, 5
      %p366 = pnand %p364, %p365
      %p367 = pneg %p366
      // Predicated region
      $region49: #{recurrent_block_sequence.1} parent=5 // pred_check
        _
      $region50: #{recurrent_block_sequence.1} parent=5 // pred_check_branch
        %369 = sbr.rel (%p366) target = $region52
      $region51: #{recurrent_block_sequence.1} parent=5 // pred_region
        %s370 = ssub.s32 %s26, 1
        %s371 = sand.u32 %s39, 1
        %s372 = scalar_lea.sflag [#allocation6], %s371
        %s373 = sand.u32 %s39, 1
        %s374 = smul.addr %s373, 8
        %s375 = scalar_lea.vmem [#allocation5], %s374
        // Predicated region
        $region53: #{recurrent_block_sequence.1} parent=51 // pred_check
          %p376 = pneg %p52
        $region54: #{recurrent_block_sequence.1} parent=51 // pred_check_branch
          %378 = sbr.rel (%p376) target = $region56
        $region55: #{recurrent_block_sequence.1} parent=51 // pred_region
          %380 = dma.done %s372, 128
        $region56: #{recurrent_block_sequence.1} parent=51 // pred_fallthru
          _
        // Predicated region
        $region57: #{recurrent_block_sequence.1} parent=51 // pred_check
          %p381 = pneg %p73
        $region58: #{recurrent_block_sequence.1} parent=51 // pred_check_branch
          %383 = sbr.rel (%p381) target = $region60
        $region59: #{recurrent_block_sequence.1} parent=51 // pred_region
          %385 = dma.done [#allocation9], 4096
        $region60: #{recurrent_block_sequence.1} parent=51 // pred_fallthru
          _
        // Predicated region
        $region61: #{recurrent_block_sequence.1} parent=51 // pred_check
          %p386 = pneg %p115
        $region62: #{recurrent_block_sequence.1} parent=51 // pred_check_branch
          %388 = sbr.rel (%p386) target = $region64
        $region63: #{recurrent_block_sequence.1} parent=51 // pred_region
          %390 = dma.done [#allocation9], 16
        $region64: #{recurrent_block_sequence.1} parent=51 // pred_fallthru
          _
        // Predicated region
        $region65: #{recurrent_block_sequence.1} parent=51 // pred_check
          %p391 = pneg %p136
        $region66: #{recurrent_block_sequence.1} parent=51 // pred_check_branch
          %393 = sbr.rel (%p391) target = $region68
        $region67: #{recurrent_block_sequence.1} parent=51 // pred_region
          %395 = dma.done [#allocation12], 16
        $region68: #{recurrent_block_sequence.1} parent=51 // pred_fallthru
          _
        // Predicated region
        $region69: #{recurrent_block_sequence.1} parent=51 // pred_check
          %p396 = pneg %p199
        $region70: #{recurrent_block_sequence.1} parent=51 // pred_check_branch
          %398 = sbr.rel (%p396) target = $region72
        $region71: #{recurrent_block_sequence.1} parent=51 // pred_region
          %400 = dma.done [#allocation12], 16
        $region72: #{recurrent_block_sequence.1} parent=51 // pred_fallthru
          _
        %s401 = sand.u32 %s39, 1
        %s402 = scalar_lea.sflag [#allocation6], %s401
        %s403 = sand.u32 %s39, 1
        %s404 = smul.addr %s403, 8
        %s405 = scalar_lea.vmem [#allocation5], %s404
        %p406 = pneg %p52
        %p407 = pneg %p49
        %p408 = pneg %p73
        %p409 = pneg %p70
        %p410 = pneg %p94
        %p411 = pneg %p91
        %p412 = pneg %p115
        %p413 = pneg %p112
        %p414 = pneg %p136
        %p415 = pneg %p133
        %p416 = pneg %p157
        %p417 = pneg %p154
        %p418 = pneg %p178
        %p419 = pneg %p175
        %p420 = pneg %p199
        %p421 = pneg %p196
        %p422 = pneg %p225
        %p423 = pneg %p222
        %s424 = sand.u32 %s212, 1
        %s425 = scalar_lea.sflag [#allocation7], %s424
        %s426 = sand.u32 %s212, 1
        %s427 = smul.addr %s426, 8
        %s428 = scalar_lea.vmem [#allocation14], %s427
        %p429 = pneg %p246
        %p430 = pneg %p243
        %p431 = pneg %p267
        %p432 = pneg %p264
        %p433 = scmp.eq.s32.totalorder %s31, 0
        // Predicated region
        $region73: #{recurrent_block_sequence.1} parent=51 // pred_check
          %p434 = pneg %p433
        $region74: #{recurrent_block_sequence.1} parent=51 // pred_check_branch
          %436 = sbr.rel (%p434) target = $region76
        $region75: #{recurrent_block_sequence.1} parent=51 // pred_region
          %437 = vst [vmem:[#allocation2] sm:$0xff] 0.0
          %438 = vst [vmem:[#allocation3] sm:$0xff] 0.0
          %439 = vst [vmem:[#allocation4] sm:$0xff] 0.0
        $region76: #{recurrent_block_sequence.1} parent=51 // pred_fallthru
          _
        %v440 = vld [vmem:[%s375] sm:$0xff]
        %v441 = vld [vmem:[#allocation2] sm:$0xff]
        %v442 = vld [vmem:[#allocation8] sm:$0xff]
        %v443 = vld [vmem:[#allocation8 + $0x8] sm:$0xff]
        %v444 = vld [vmem:[#allocation8 + $0x10] sm:$0xff]
        %v445 = vld [vmem:[#allocation8 + $0x18] sm:$0xff]
        %v446 = vld [vmem:[#allocation8 + $0x20] sm:$0xff]
        %v447 = vld [vmem:[#allocation8 + $0x28] sm:$0xff]
        %v448 = vld [vmem:[#allocation8 + $0x30] sm:$0xff]
        %v449 = vld [vmem:[#allocation8 + $0x38] sm:$0xff]
        %v450 = vld [vmem:[#allocation8 + $0x40] sm:$0xff]
        %v451 = vld [vmem:[#allocation8 + $0x48] sm:$0xff]
        %v452 = vld [vmem:[#allocation8 + $0x50] sm:$0xff]
        %v453 = vld [vmem:[#allocation8 + $0x58] sm:$0xff]
        %v454 = vld [vmem:[#allocation8 + $0x60] sm:$0xff]
        %v455 = vld [vmem:[#allocation8 + $0x68] sm:$0xff]
        %v456 = vld [vmem:[#allocation8 + $0x70] sm:$0xff]
        %v457 = vld [vmem:[#allocation8 + $0x78] sm:$0xff]
        %v458 = vld [vmem:[#allocation8 + $0x80] sm:$0xff]
        %v459 = vld [vmem:[#allocation8 + $0x88] sm:$0xff]
        %v460 = vld [vmem:[#allocation8 + $0x90] sm:$0xff]
        %v461 = vld [vmem:[#allocation8 + $0x98] sm:$0xff]
        %v462 = vld [vmem:[#allocation8 + $0xa0] sm:$0xff]
        %v463 = vld [vmem:[#allocation8 + $0xa8] sm:$0xff]
        %v464 = vld [vmem:[#allocation8 + $0xb0] sm:$0xff]
        %v465 = vld [vmem:[#allocation8 + $0xb8] sm:$0xff]
        %v466 = vld [vmem:[#allocation8 + $0xc0] sm:$0xff]
        %v467 = vld [vmem:[#allocation8 + $0xc8] sm:$0xff]
        %v468 = vld [vmem:[#allocation8 + $0xd0] sm:$0xff]
        %v469 = vld [vmem:[#allocation8 + $0xd8] sm:$0xff]
        %v470 = vld [vmem:[#allocation8 + $0xe0] sm:$0xff]
        %v471 = vld [vmem:[#allocation8 + $0xe8] sm:$0xff]
        %v472 = vld [vmem:[#allocation8 + $0xf0] sm:$0xff]
        %v473 = vld [vmem:[#allocation8 + $0xf8] sm:$0xff]
        %v474 = vld [vmem:[%s2] sm:$0x1]
        %v476 = vperm.slane %v474, 0
        %478 = vmatpush.msra.mxu0 %v457
        %479 = vmatpush.msra.mxu0 %v456
        %480 = vmatpush.msra.mxu0 %v455
        %481 = vmatpush.msra.mxu0 %v454
        %482 = vmatpush.msra.mxu0 %v453
        %483 = vmatpush.msra.mxu0 %v452
        %484 = vmatpush.msra.mxu0 %v451
        %485 = vmatpush.msra.mxu0 %v450
        %486 = vmatpush.msra.mxu0 %v449
        %487 = vmatpush.msra.mxu0 %v448
        %488 = vmatpush.msra.mxu0 %v447
        %489 = vmatpush.msra.mxu0 %v446
        %490 = vmatpush.msra.mxu0 %v445
        %491 = vmatpush.msra.mxu0 %v444
        %492 = vmatpush.msra.mxu0 %v443
        %493 = vmatpush.msra.mxu0 %v442
        %494 = vmatmul.f32.gmra.mxu0 %v440
        %v495 = vpop.f32.mrf.mxu0
        %v496 = vadd.f32 %v476, %v495
        %497 = vdwg.mxu0
        %498 = vmatpush.msra.mxu0 %v473
        %499 = vmatpush.msra.mxu0 %v472
        %500 = vmatpush.msra.mxu0 %v471
        %501 = vmatpush.msra.mxu0 %v470
        %502 = vmatpush.msra.mxu0 %v469
        %503 = vmatpush.msra.mxu0 %v468
        %504 = vmatpush.msra.mxu0 %v467
        %505 = vmatpush.msra.mxu0 %v466
        %506 = vmatpush.msra.mxu0 %v465
        %507 = vmatpush.msra.mxu0 %v464
        %508 = vmatpush.msra.mxu0 %v463
        %509 = vmatpush.msra.mxu0 %v462
        %510 = vmatpush.msra.mxu0 %v461
        %511 = vmatpush.msra.mxu0 %v460
        %512 = vmatpush.msra.mxu0 %v459
        %513 = vmatpush.msra.mxu0 %v458
        %514 = vmatmul.f32.gmra.mxu0 %v441
        %v515 = vpop.f32.mrf.mxu0
        %v516 = vadd.f32 %v496, %v515
        %517 = vdwg.mxu0
        %p518 = scmp.gt.s32.totalorder %s31, 0
        %s519 = scalar_select %p518, 1.0, 0.0
        %v520 = vld [vmem:[#allocation10] sm:$0x1]
        %v521 = vstv %s519
        %v522 = vmul.f32 %v521, %v520
        %v524 = vperm.slane %v522, 0
        %v526 = vadd.f32 %v516, %v524
        %v527 = vld [vmem:[#allocation3] sm:$0xff]
        %v528 = vld [vmem:[#allocation11] sm:$0x1]
        %v530 = vperm.slane %v528, 0
        %v532 = vmul.f32 %v527, %v530
        %v533 = vld [vmem:[%s5] sm:$0x1]
        %v535 = vperm.slane %v533, 0
        %v537 = vmul.f32 %v535, %v526
        %v538 = vadd.f32 %v532, %v537
        %v539 = vld [vmem:[#allocation4] sm:$0xff]
        %v540 = vmul.f32 %v539, 1.8
        %v541 = vadd.f32 %v540, 0.2
        %v542 = vsub.f32 %v538, %v541
        %vm543 = vcmp.gt.f32.partialorder %v542, 0.0
        %v544 = vsel %vm543, 1, 0
        %v545 = vcvt.s32.f32 %v544
        %v546 = vmul.f32 %v545, %v541
        %v547 = vsub.f32 %v538, %v546
        %v548 = vld [vmem:[%s6] sm:$0x1]
        %v550 = vperm.slane %v548, 0
        %v552 = vmul.f32 %v550, %v539
        %v553 = vld [vmem:[#allocation13] sm:$0x1]
        %v555 = vperm.slane %v553, 0
        %v557 = vmul.f32 %v555, %v545
        %v558 = vadd.f32 %v552, %v557
        %559 = vst [vmem:[#allocation2] sm:$0xff] %v545
        %560 = vst [vmem:[#allocation3] sm:$0xff] %v547
        %561 = vst [vmem:[#allocation4] sm:$0xff] %v558
        %562 = vst [vmem:[%s428] sm:$0xff] %v545
        %563 = vst [vmem:[#allocation15] sm:$0xff] %v547
        %564 = vst [vmem:[#allocation17] sm:$0xff] %v558
        %s565 = sand.u32 %s212, 1
        %s566 = scalar_lea.sflag [#allocation7], %s565
        %s567 = sand.u32 %s212, 1
        %s568 = smul.addr %s567, 8
        %s569 = scalar_lea.vmem [#allocation14], %s568
        // Predicated region
        $region77: #{recurrent_block_sequence.1} parent=51 // pred_check
          %p570 = pneg %p222
        $region78: #{recurrent_block_sequence.1} parent=51 // pred_check_branch
          %572 = sbr.rel (%p570) target = $region80
        $region79: #{recurrent_block_sequence.1} parent=51 // pred_region
          %574 = vsyncadd %s566, 0
          %s575 = smul.addr %s31, 8
          %s576 = scalar_lea.hbm %s8, %s575
          %s578 = sshll.u32 %s569, 4
          %s579 = int_to_ptr.vmem [resolvable:$true] %s578
          %s580 = sshll.u32 %s576, 4
          %s581 = int_to_ptr.hbm [resolvable:$true] %s580
          %583 = dma.vmem_to_hbm [thread:$0]  %s579, 128, %s581, %s566
        $region80: #{recurrent_block_sequence.1} parent=51 // pred_fallthru
          _
        // Predicated region
        $region81: #{recurrent_block_sequence.1} parent=51 // pred_check
          %p584 = pneg %p243
        $region82: #{recurrent_block_sequence.1} parent=51 // pred_check_branch
          %586 = sbr.rel (%p584) target = $region84
        $region83: #{recurrent_block_sequence.1} parent=51 // pred_region
          %588 = vsyncadd [#allocation16], 0
          %s590 = sshll.u32 [#allocation15], 4
          %s591 = int_to_ptr.vmem [resolvable:$true] %s590
          %s592 = sshll.u32 %s9, 4
          %s593 = int_to_ptr.hbm [resolvable:$true] %s592
          %595 = dma.vmem_to_hbm [thread:$0]  %s591, 128, %s593, [#allocation16]
        $region84: #{recurrent_block_sequence.1} parent=51 // pred_fallthru
          _
        // Predicated region
        $region85: #{recurrent_block_sequence.1} parent=51 // pred_check
          %p596 = pneg %p264
        $region86: #{recurrent_block_sequence.1} parent=51 // pred_check_branch
          %598 = sbr.rel (%p596) target = $region88
        $region87: #{recurrent_block_sequence.1} parent=51 // pred_region
          %600 = vsyncadd [#allocation16], 0
          %s602 = sshll.u32 [#allocation17], 4
          %s603 = int_to_ptr.vmem [resolvable:$true] %s602
          %s604 = sshll.u32 %s10, 4
          %s605 = int_to_ptr.hbm [resolvable:$true] %s604
          %607 = dma.vmem_to_hbm [thread:$0]  %s603, 128, %s605, [#allocation16]
        $region88: #{recurrent_block_sequence.1} parent=51 // pred_fallthru
          _
        // Predicated region
        $region89: #{recurrent_block_sequence.1} parent=51 // pred_check
          %p608 = pneg %p243
        $region90: #{recurrent_block_sequence.1} parent=51 // pred_check_branch
          %610 = sbr.rel (%p608) target = $region92
        $region91: #{recurrent_block_sequence.1} parent=51 // pred_region
          %612 = dma.done [#allocation16], 128
        $region92: #{recurrent_block_sequence.1} parent=51 // pred_fallthru
          _
        // Predicated region
        $region93: #{recurrent_block_sequence.1} parent=51 // pred_check
          %p613 = pneg %p264
        $region94: #{recurrent_block_sequence.1} parent=51 // pred_check_branch
          %615 = sbr.rel (%p613) target = $region96
        $region95: #{recurrent_block_sequence.1} parent=51 // pred_region
          %617 = dma.done [#allocation16], 128
        $region96: #{recurrent_block_sequence.1} parent=51 // pred_fallthru
          _
      $region52: #{recurrent_block_sequence.1} parent=5 // pred_fallthru
        _
      %p618 = scmp.le.s32.totalorder 2, %s26
      // Predicated region
      $region97: #{recurrent_block_sequence.1} parent=5 // pred_check
        %p619 = pneg %p618
      $region98: #{recurrent_block_sequence.1} parent=5 // pred_check_branch
        %621 = sbr.rel (%p619) target = $region100
      $region99: #{recurrent_block_sequence.1} parent=5 // pred_region
        %s622 = ssub.s32 %s26, 2
        // Predicated region
        $region101: #{recurrent_block_sequence.1} parent=99 // pred_check
          %p623 = pneg %p228
        $region102: #{recurrent_block_sequence.1} parent=99 // pred_check_branch
          %625 = sbr.rel (%p623) target = $region104
        $region103: #{recurrent_block_sequence.1} parent=99 // pred_region
          %s626 = sand.u32 %s213, 1
          %s627 = scalar_lea.sflag [#allocation7], %s626
          %s628 = sand.u32 %s213, 1
          %s629 = smul.addr %s628, 8
          %s630 = scalar_lea.vmem [#allocation14], %s629
          %632 = dma.done %s627, 128
        $region104: #{recurrent_block_sequence.1} parent=99 // pred_fallthru
          _
      $region100: #{recurrent_block_sequence.1} parent=5 // pred_fallthru
        _
    $region6: #{recurrent_block_sequence.1} parent=1 // loop_footer
      %s30 = sadd.s32 1, %s26
    $region7: #{recurrent_block_sequence.1} parent=1 // loop_footer_branch
      %25 = sbr.rel target = $region3
    $region8: #{recurrent_block_sequence.1} parent=1 // loop_exit
      _
    %633 = vsyncpa [#allocation6], 1
    %s634 = scalar_lea.sflag [#allocation6], 1
    %635 = vsyncpa %s634, 1
    %636 = vsyncpa [#allocation9], 1
    %637 = vsyncpa [#allocation12], 1
    %638 = vsyncpa [#allocation7], 1
    %s639 = scalar_lea.sflag [#allocation7], 1
    %640 = vsyncpa %s639, 1
    %641 = vsyncpa [#allocation16], 1

</llo_original>
